<compile_context>
chip_gen: v7x
topology: tpu7x:2x2x1
jax: 0.10.0
libtpu: 0.0.40
codegen_flags: <defaults>
</compile_context>

<pallas_src>
import functools

import jax
import jax.numpy as jnp
from jax import lax
from jax.experimental import pallas as pl
from jax.experimental.pallas import tpu as pltpu


def _bert_embedding_kernel(
    ids_ref,      # VMEM (T, 1) int32  token ids for this tile
    pos_ref,      # VMEM (T, 1) int32  position ids for this tile
    seg_ref,      # VMEM (T, 1) int32  segment ids for this tile
    word_ref,     # VMEM (V, D) f32    full word-embedding table (resident)
    post_ref,     # VMEM (L, D) f32    full position-embedding table (resident)
    segt_ref,     # VMEM (G, D) f32    full segment-embedding table (resident)
    gamma_ref,    # VMEM (1, D) f32    LayerNorm weight
    beta_ref,     # VMEM (1, D) f32    LayerNorm bias
    o_ref,        # VMEM (T, D) f32    output tile
    *,
    eps: float,
    n_segments: int,
):
    T = ids_ref.shape[0]
    V = word_ref.shape[0]
    L = post_ref.shape[0]

    ids = ids_ref[...]                                    # (T, 1) int32
    pos = pos_ref[...]                                    # (T, 1) int32
    seg = seg_ref[...]                                    # (T, 1) int32

    # Word lookup: one-hot (T, V) @ (V, D) on the MXU (table stays in VMEM).
    w_oh = (ids == lax.broadcasted_iota(jnp.int32, (T, V), 1)).astype(jnp.float32)
    x = jnp.dot(w_oh, word_ref[...], preferred_element_type=jnp.float32)

    # Position lookup: one-hot (T, L) @ (L, D) on the MXU.
    p_oh = (pos == lax.broadcasted_iota(jnp.int32, (T, L), 1)).astype(jnp.float32)
    x = x + jnp.dot(p_oh, post_ref[...], preferred_element_type=jnp.float32)

    # Segment lookup: <= a few rows -> pure VPU select (no DMA, no MXU).
    seg_rows = segt_ref[...]                              # (G, D)
    seg_emb = jnp.zeros_like(x)
    for k in range(n_segments):                           # static, tiny
        sel = (seg == k).astype(jnp.float32)              # (T, 1)
        seg_emb = seg_emb + sel * seg_rows[k:k + 1, :]
    x = x + seg_emb

    # LayerNorm over D (f32 throughout; rsqrt goes to the EUP).
    mu = jnp.mean(x, axis=-1, keepdims=True)
    xc = x - mu
    var = jnp.mean(xc * xc, axis=-1, keepdims=True)
    inv = lax.rsqrt(var + eps)
    o_ref[...] = (xc * inv) * gamma_ref[...] + beta_ref[...]


def bert_embedding_forward(
    input_ids,        # (B, S) int32
    token_type_ids,   # (B, S) int32
    position_ids,     # (B, S) int32
    word_table,       # (V, D) f32
    pos_table,        # (L, D) f32
    seg_table,        # (G, D) f32
    gamma,            # (D,) f32
    beta,             # (D,) f32
    *,
    eps: float = 1e-12,
    tokens_per_tile: int = 128,
):
    B, S = input_ids.shape
    V, D = word_table.shape
    L = pos_table.shape[0]
    G = seg_table.shape[0]
    N = B * S

    # Tile of T tokens per grid step: multiple of 8 (sublane), at most 128.
    T = min(tokens_per_tile, ((N + 7) // 8) * 8)
    T = max(8, (T // 8) * 8)
    n_tiles = pl.cdiv(N, T)
    N_pad = n_tiles * T

    def _flat_pad(a):
        a = a.reshape(N).astype(jnp.int32)
        if N_pad != N:
            a = jnp.pad(a, (0, N_pad - N))        # padded rows use valid index 0
        return a.reshape(N_pad, 1)

    ids = _flat_pad(input_ids)
    pos = _flat_pad(position_ids)
    seg = _flat_pad(token_type_ids)

    gamma2d = gamma.reshape(1, D).astype(jnp.float32)
    beta2d = beta.reshape(1, D).astype(jnp.float32)

    grid_spec = pltpu.PrefetchScalarGridSpec(
        num_scalar_prefetch=0,
        grid=(n_tiles,),
        in_specs=[
            pl.BlockSpec((T, 1), lambda i: (i, 0)),     # token ids tile
            pl.BlockSpec((T, 1), lambda i: (i, 0)),     # position ids tile
            pl.BlockSpec((T, 1), lambda i: (i, 0)),     # segment ids tile
            pl.BlockSpec((V, D), lambda i: (0, 0)),     # word table (VMEM-resident)
            pl.BlockSpec((L, D), lambda i: (0, 0)),     # position table (resident)
            pl.BlockSpec((G, D), lambda i: (0, 0)),     # segment table (resident)
            pl.BlockSpec((1, D), lambda i: (0, 0)),     # LayerNorm gamma
            pl.BlockSpec((1, D), lambda i: (0, 0)),     # LayerNorm beta
        ],
        out_specs=pl.BlockSpec((T, D), lambda i: (i, 0)),
    )

    out_flat = pl.pallas_call(
        functools.partial(_bert_embedding_kernel, eps=eps, n_segments=G),
        grid_spec=grid_spec,
        out_shape=jax.ShapeDtypeStruct((N_pad, D), jnp.float32),
        # NOTE: for real-size tables raise vmem_limit_bytes here (v5e/v6e) or
        # switch the word table to a manual HBM gather (v7x, 64 MiB VMEM).
        compiler_params=pltpu.CompilerParams(
            dimension_semantics=("parallel",)),
    )(ids, pos, seg,
      word_table.astype(jnp.float32), pos_table.astype(jnp.float32),
      seg_table.astype(jnp.float32), gamma2d, beta2d)

    return out_flat[:N].reshape(B, S, D)


def _reference(input_ids, token_type_ids, position_ids,
               word_table, pos_table, seg_table, gamma, beta, eps=1e-12):
    x = (word_table[input_ids]
         + pos_table[position_ids]
         + seg_table[token_type_ids])
    mu = jnp.mean(x, axis=-1, keepdims=True)
    var = jnp.mean((x - mu) ** 2, axis=-1, keepdims=True)
    return (x - mu) * lax.rsqrt(var + eps) * gamma + beta


if __name__ == "__main__":
    # BertEmbedding(dim=128, vocab_size=256, n_segments=2, max_len=64,
    #               padding_index=0, layer_norm_eps=1e-12), eval mode.
    B, S = 2, 8
    dim = 128
    vocab_size = 256
    n_segments = 2
    max_len = 64
    padding_index = 0
    eps = 1e-12

    key = jax.random.PRNGKey(0)
    k_w, k_p, k_s, k_ids, k_seg = jax.random.split(key, 5)

    # Deterministic synthetic parameters.
    word_table = jax.random.normal(k_w, (vocab_size, dim), jnp.float32) * 0.02
    word_table = word_table.at[padding_index].set(0.0)     # padding row zeroed
    pos_table = jax.random.normal(k_p, (max_len, dim), jnp.float32) * 0.02
    seg_table = jax.random.normal(k_s, (n_segments, dim), jnp.float32) * 0.02
    gamma = jnp.ones((dim,), jnp.float32)                   # LayerNorm default init
    beta = jnp.zeros((dim,), jnp.float32)

    # Inputs.
    input_ids = jax.random.randint(k_ids, (B, S), 0, vocab_size, jnp.int32)
    token_type_ids = jax.random.randint(k_seg, (B, S), 0, n_segments, jnp.int32)
    # position_ids = self.position_ids[:, :S]  (position_offset == 0)
    position_ids = jnp.broadcast_to(jnp.arange(S, dtype=jnp.int32), (B, S))

    out = bert_embedding_forward(
        input_ids, token_type_ids, position_ids,
        word_table, pos_table, seg_table, gamma, beta, eps=eps)
    out = jax.block_until_ready(out)

    ref = _reference(input_ids, token_type_ids, position_ids,
                     word_table, pos_table, seg_table, gamma, beta, eps)
    assert out.shape == (B, S, dim)
    assert jnp.allclose(out, ref, atol=1e-5, rtol=1e-5), "mismatch vs JAX reference"

    # TODO(synk): dropout (train-mode), dist-token-update gradient hooks, and
    # the optional token_embedding_proj / out_proj / AdaptiveEmbedding branches
    # are not part of the default eval forward and are not implemented.
    print("KERNEL_OK")
</pallas_src>

<mosaic_0001>
module attributes {stable_mosaic.version = 11 : i64} {
  func.func @_bert_embedding_kernel(%arg0: i32, %arg1: memref<16x1xi32, #tpu.memory_space<vmem>>, %arg2: memref<16x1xi32, #tpu.memory_space<vmem>>, %arg3: memref<16x1xi32, #tpu.memory_space<vmem>>, %arg4: memref<256x128xf32, #tpu.memory_space<vmem>>, %arg5: memref<64x128xf32, #tpu.memory_space<vmem>>, %arg6: memref<2x128xf32, #tpu.memory_space<vmem>>, %arg7: memref<1x128xf32, #tpu.memory_space<vmem>>, %arg8: memref<1x128xf32, #tpu.memory_space<vmem>>, %arg9: memref<16x128xf32, #tpu.memory_space<vmem>>) attributes {dimension_semantics = [#tpu.dimension_semantics<parallel>], iteration_bounds = array<i64: 1>, scalar_prefetch = 0 : i64, scratch_operands = 0 : i64, tpu.core_type = #tpu.core_type<tc>, window_params = [{transform_indices = @transform_0, window_bounds = array<i64: 16, 1>}, {transform_indices = @transform_1, window_bounds = array<i64: 16, 1>}, {transform_indices = @transform_2, window_bounds = array<i64: 16, 1>}, {pipeline_mode = #tpu.pipeline_mode<synchronous>, transform_indices = @transform_3, window_bounds = array<i64: 256, 128>}, {pipeline_mode = #tpu.pipeline_mode<synchronous>, transform_indices = @transform_4, window_bounds = array<i64: 64, 128>}, {pipeline_mode = #tpu.pipeline_mode<synchronous>, transform_indices = @transform_5, window_bounds = array<i64: 2, 128>}, {pipeline_mode = #tpu.pipeline_mode<synchronous>, transform_indices = @transform_6, window_bounds = array<i64: 1, 128>}, {pipeline_mode = #tpu.pipeline_mode<synchronous>, transform_indices = @transform_7, window_bounds = array<i64: 1, 128>}, {transform_indices = @transform_8, window_bounds = array<i64: 16, 128>}]} {
    %c0 = arith.constant 0 : index
    %c0_0 = arith.constant 0 : index
    %0 = vector.load %arg1[%c0, %c0_0] : memref<16x1xi32, #tpu.memory_space<vmem>>, vector<16x1xi32>
    %c0_1 = arith.constant 0 : index
    %c0_2 = arith.constant 0 : index
    %1 = vector.load %arg2[%c0_1, %c0_2] : memref<16x1xi32, #tpu.memory_space<vmem>>, vector<16x1xi32>
    %c0_3 = arith.constant 0 : index
    %c0_4 = arith.constant 0 : index
    %2 = vector.load %arg3[%c0_3, %c0_4] : memref<16x1xi32, #tpu.memory_space<vmem>>, vector<16x1xi32>
    %3 = tpu.iota {dimensions = array<i32: 1>} : vector<16x256xi32>
    %4 = vector.broadcast %0 : vector<16x1xi32> to vector<16x256xi32>
    %5 = arith.cmpi eq, %4, %3 : vector<16x256xi32>
    %6 = arith.extui %5 : vector<16x256xi1> to vector<16x256xi32>
    %7 = arith.sitofp %6 : vector<16x256xi32> to vector<16x256xf32>
    %c0_5 = arith.constant 0 : index
    %c0_6 = arith.constant 0 : index
    %8 = vector.load %arg4[%c0_5, %c0_6] : memref<256x128xf32, #tpu.memory_space<vmem>>, vector<256x128xf32>
    %cst = arith.constant dense<0.000000e+00> : vector<16x128xf32>
    %9 = tpu.matmul %7, %8, %cst {dimension_numbers = #tpu.dot_dimension_numbers<[1], [0], [0], [1], [0, 0, 1, 1], [], []>} : vector<16x256xf32>, vector<256x128xf32>, vector<16x128xf32> -> vector<16x128xf32>
    %10 = tpu.iota {dimensions = array<i32: 1>} : vector<16x64xi32>
    %11 = vector.broadcast %1 : vector<16x1xi32> to vector<16x64xi32>
    %12 = arith.cmpi eq, %11, %10 : vector<16x64xi32>
    %13 = arith.extui %12 : vector<16x64xi1> to vector<16x64xi32>
    %14 = arith.sitofp %13 : vector<16x64xi32> to vector<16x64xf32>
    %c0_7 = arith.constant 0 : index
    %c0_8 = arith.constant 0 : index
    %15 = vector.load %arg5[%c0_7, %c0_8] : memref<64x128xf32, #tpu.memory_space<vmem>>, vector<64x128xf32>
    %cst_9 = arith.constant dense<0.000000e+00> : vector<16x128xf32>
    %16 = tpu.matmul %14, %15, %cst_9 {dimension_numbers = #tpu.dot_dimension_numbers<[1], [0], [0], [1], [0, 0, 1, 1], [], []>} : vector<16x64xf32>, vector<64x128xf32>, vector<16x128xf32> -> vector<16x128xf32>
    %17 = arith.addf %9, %16 : vector<16x128xf32>
    %c0_10 = arith.constant 0 : index
    %c0_11 = arith.constant 0 : index
    %18 = vector.load %arg6[%c0_10, %c0_11] : memref<2x128xf32, #tpu.memory_space<vmem>>, vector<2x128xf32>
    %cst_12 = arith.constant 0.000000e+00 : f32
    %19 = vector.broadcast %cst_12 : f32 to vector<16x128xf32>
    %c0_i32 = arith.constant 0 : i32
    %20 = vector.broadcast %c0_i32 : i32 to vector<16x1xi32>
    %21 = arith.cmpi eq, %2, %20 : vector<16x1xi32>
    %22 = arith.extui %21 : vector<16x1xi1> to vector<16x1xi32>
    %23 = arith.sitofp %22 : vector<16x1xi32> to vector<16x1xf32>
    %24 = vector.extract_strided_slice %18 {offsets = [0, 0], sizes = [1, 128], strides = [1, 1]} : vector<2x128xf32> to vector<1x128xf32>
    %25 = vector.broadcast %23 : vector<16x1xf32> to vector<16x128xf32>
    %26 = vector.broadcast %24 : vector<1x128xf32> to vector<16x128xf32>
    %27 = arith.mulf %25, %26 : vector<16x128xf32>
    %28 = arith.addf %19, %27 : vector<16x128xf32>
    %c1_i32 = arith.constant 1 : i32
    %29 = vector.broadcast %c1_i32 : i32 to vector<16x1xi32>
    %30 = arith.cmpi eq, %2, %29 : vector<16x1xi32>
    %31 = arith.extui %30 : vector<16x1xi1> to vector<16x1xi32>
    %32 = arith.sitofp %31 : vector<16x1xi32> to vector<16x1xf32>
    %33 = vector.extract_strided_slice %18 {offsets = [1, 0], sizes = [1, 128], strides = [1, 1]} : vector<2x128xf32> to vector<1x128xf32>
    %34 = vector.broadcast %32 : vector<16x1xf32> to vector<16x128xf32>
    %35 = vector.broadcast %33 : vector<1x128xf32> to vector<16x128xf32>
    %36 = arith.mulf %34, %35 : vector<16x128xf32>
    %37 = arith.addf %28, %36 : vector<16x128xf32>
    %38 = arith.addf %17, %37 : vector<16x128xf32>
    %cst_13 = arith.constant dense<0.000000e+00> : vector<16xf32>
    %39 = vector.multi_reduction <add>, %38, %cst_13 [1] : vector<16x128xf32> to vector<16xf32>
    %40 = vector.shape_cast %39 : vector<16xf32> to vector<16x1xf32>
    %cst_14 = arith.constant 1.280000e+02 : f32
    %41 = vector.broadcast %cst_14 : f32 to vector<16x1xf32>
    %42 = arith.divf %40, %41 : vector<16x1xf32>
    %43 = vector.broadcast %42 : vector<16x1xf32> to vector<16x128xf32>
    %44 = arith.subf %38, %43 : vector<16x128xf32>
    %45 = arith.mulf %44, %44 : vector<16x128xf32>
    %cst_15 = arith.constant dense<0.000000e+00> : vector<16xf32>
    %46 = vector.multi_reduction <add>, %45, %cst_15 [1] : vector<16x128xf32> to vector<16xf32>
    %47 = vector.shape_cast %46 : vector<16xf32> to vector<16x1xf32>
    %cst_16 = arith.constant 1.280000e+02 : f32
    %48 = vector.broadcast %cst_16 : f32 to vector<16x1xf32>
    %49 = arith.divf %47, %48 : vector<16x1xf32>
    %cst_17 = arith.constant 9.99999996E-13 : f32
    %50 = vector.broadcast %cst_17 : f32 to vector<16x1xf32>
    %51 = arith.addf %49, %50 : vector<16x1xf32>
    %52 = math.rsqrt %51 : vector<16x1xf32>
    %53 = vector.broadcast %52 : vector<16x1xf32> to vector<16x128xf32>
    %54 = arith.mulf %44, %53 : vector<16x128xf32>
    %c0_18 = arith.constant 0 : index
    %c0_19 = arith.constant 0 : index
    %55 = vector.load %arg7[%c0_18, %c0_19] : memref<1x128xf32, #tpu.memory_space<vmem>>, vector<1x128xf32>
    %56 = vector.broadcast %55 : vector<1x128xf32> to vector<16x128xf32>
    %57 = arith.mulf %54, %56 : vector<16x128xf32>
    %c0_20 = arith.constant 0 : index
    %c0_21 = arith.constant 0 : index
    %58 = vector.load %arg8[%c0_20, %c0_21] : memref<1x128xf32, #tpu.memory_space<vmem>>, vector<1x128xf32>
    %59 = vector.broadcast %58 : vector<1x128xf32> to vector<16x128xf32>
    %60 = arith.addf %57, %59 : vector<16x128xf32>
    %c0_22 = arith.constant 0 : index
    %c0_23 = arith.constant 0 : index
    %61 = vector.load %arg9[%c0_22, %c0_23] : memref<16x128xf32, #tpu.memory_space<vmem>>, vector<16x128xf32>
    tpu.vector_store %arg9[%c0_22, %c0_23], %60 {strides = array<i32>} : memref<16x128xf32, #tpu.memory_space<vmem>>, vector<16x128xf32>,
    return
  }
  func.func @transform_0(%arg0: i32) -> (i32, i32) {
    %c0_i32 = arith.constant 0 : i32
    %c0_i32_0 = arith.constant 0 : i32
    return %arg0, %c0_i32 : i32, i32
  }
  func.func @transform_1(%arg0: i32) -> (i32, i32) {
    %c0_i32 = arith.constant 0 : i32
    %c0_i32_0 = arith.constant 0 : i32
    return %arg0, %c0_i32 : i32, i32
  }
  func.func @transform_2(%arg0: i32) -> (i32, i32) {
    %c0_i32 = arith.constant 0 : i32
    %c0_i32_0 = arith.constant 0 : i32
    return %arg0, %c0_i32 : i32, i32
  }
  func.func @transform_3(%arg0: i32) -> (i32, i32) {
    %c0_i32 = arith.constant 0 : i32
    %c0_i32_0 = arith.constant 0 : i32
    %c0_i32_1 = arith.constant 0 : i32
    return %c0_i32, %c0_i32_0 : i32, i32
  }
  func.func @transform_4(%arg0: i32) -> (i32, i32) {
    %c0_i32 = arith.constant 0 : i32
    %c0_i32_0 = arith.constant 0 : i32
    %c0_i32_1 = arith.constant 0 : i32
    return %c0_i32, %c0_i32_0 : i32, i32
  }
  func.func @transform_5(%arg0: i32) -> (i32, i32) {
    %c0_i32 = arith.constant 0 : i32
    %c0_i32_0 = arith.constant 0 : i32
    %c0_i32_1 = arith.constant 0 : i32
    return %c0_i32, %c0_i32_0 : i32, i32
  }
  func.func @transform_6(%arg0: i32) -> (i32, i32) {
    %c0_i32 = arith.constant 0 : i32
    %c0_i32_0 = arith.constant 0 : i32
    %c0_i32_1 = arith.constant 0 : i32
    return %c0_i32, %c0_i32_0 : i32, i32
  }
  func.func @transform_7(%arg0: i32) -> (i32, i32) {
    %c0_i32 = arith.constant 0 : i32
    %c0_i32_0 = arith.constant 0 : i32
    %c0_i32_1 = arith.constant 0 : i32
    return %c0_i32, %c0_i32_0 : i32, i32
  }
  func.func @transform_8(%arg0: i32) -> (i32, i32) {
    %c0_i32 = arith.constant 0 : i32
    %c0_i32_0 = arith.constant 0 : i32
    return %arg0, %c0_i32 : i32, i32
  }
}

</mosaic_0001>

<llo_original>
// kernel: tpu_custom_call.1
$region0: #{tpu_custom_call.1}
  #allocation0 [shape = 'u32[]', space=smem, size = 0x4, offset = 0x4, fixed_abs, tag = 'smem constant byte address 0x4 - core index']
  #allocation1 [shape = 'u32[144,128]{1,0:T(1,128)}', space=vmem, size = 0x12000, scoped, tag = 'internal scratch']
  %s0 = inlined_call_operand.vmem [shape: s32[16,1], index: 0, kind: input, shape index: {}]
  %s1 = inlined_call_operand.vmem [shape: s32[16,1], index: 1, kind: input, shape index: {}]
  %s2 = inlined_call_operand.vmem [shape: s32[16,1], index: 2, kind: input, shape index: {}]
  %s3 = inlined_call_operand.hbm [shape: f32[256,128], index: 3, kind: input, shape index: {}]
  %s4 = inlined_call_operand.vmem [shape: f32[64,128], index: 4, kind: input, shape index: {}]
  %s5 = inlined_call_operand.vmem [shape: f32[2,128], index: 5, kind: input, shape index: {}]
  %s6 = inlined_call_operand.vmem [shape: f32[1,128], index: 6, kind: input, shape index: {}]
  %s7 = inlined_call_operand.vmem [shape: f32[1,128], index: 7, kind: input, shape index: {}]
  %s8 = inlined_call_operand.hbm [shape: f32[16,128], index: 8, kind: output, shape index: {}]
  %s9 = sld [smem:[#allocation0]]
  $region46: #{tpu_custom_call.1} parent=0
    _
  %s11 = ssub.s32 1, %s9
  %s12 = scalar_select 0, %s11, %s9
  $region1: #{tpu_custom_call.1} parent=0
    #allocation2 [shape = 'u8[131072]{0}', space=vmem, size = 0x20000, scoped, tag = 'input window, operand 3, single buffered']
    #allocation3 [shape = 's32[1]{0}', space=sflag, size = 0x4, scoped, tag = 'scoped memory for tpu_custom_call.1']
    #allocation4 [shape = 's32[1]{0}', space=sflag, size = 0x4, scoped, tag = 'scoped memory for tpu_custom_call.1']
    #allocation5 [shape = 'u8[8192]{0}', space=vmem, size = 0x2000, scoped, tag = 'output window, operand 0, single buffered']
    %13 = vsyncpa [#allocation3], 0
    %14 = vsyncpa [#allocation4], 0
    // Predicated region
    $region2: #{tpu_custom_call.1} parent=1 // pred_check
      _
    $region3: #{tpu_custom_call.1} parent=1 // pred_check_branch
      %16 = sbr.rel (0) target = $region5
    $region4: #{tpu_custom_call.1} parent=1 // pred_region
      _
    $region5: #{tpu_custom_call.1} parent=1 // pred_fallthru
      _
    // Predicated region
    $region6: #{tpu_custom_call.1} parent=1 // pred_check
      _
    $region7: #{tpu_custom_call.1} parent=1 // pred_check_branch
      %18 = sbr.rel (0) target = $region9
    $region8: #{tpu_custom_call.1} parent=1 // pred_region
      _
    $region9: #{tpu_custom_call.1} parent=1 // pred_fallthru
      _
    // Predicated region
    $region10: #{tpu_custom_call.1} parent=1 // pred_check
      _
    $region11: #{tpu_custom_call.1} parent=1 // pred_check_branch
      %20 = sbr.rel (0) target = $region13
    $region12: #{tpu_custom_call.1} parent=1 // pred_region
      _
    $region13: #{tpu_custom_call.1} parent=1 // pred_fallthru
      _
    // Predicated region
    $region14: #{tpu_custom_call.1} parent=1 // pred_check
      _
    $region15: #{tpu_custom_call.1} parent=1 // pred_check_branch
      %22 = sbr.rel (0) target = $region17
    $region16: #{tpu_custom_call.1} parent=1 // pred_region
      %s24 = ssub.s32 4096, 4096
      %25 = vsyncadd [#allocation3], %s24
      %s26 = sshll.u32 [#allocation2], 4
      %s27 = int_to_ptr.vmem [resolvable:$true] %s26
      %32 = dma.hbm_to_vmem [thread:$0]  %s3, 4096, %s27, [#allocation3], 128, 128, 8
    $region17: #{tpu_custom_call.1} parent=1 // pred_fallthru
      _
    // Predicated region
    $region18: #{tpu_custom_call.1} parent=1 // pred_check
      _
    $region19: #{tpu_custom_call.1} parent=1 // pred_check_branch
      %34 = sbr.rel (0) target = $region21
    $region20: #{tpu_custom_call.1} parent=1 // pred_region
      _
    $region21: #{tpu_custom_call.1} parent=1 // pred_fallthru
      _
    // Predicated region
    $region22: #{tpu_custom_call.1} parent=1 // pred_check
      _
    $region23: #{tpu_custom_call.1} parent=1 // pred_check_branch
      %36 = sbr.rel (0) target = $region25
    $region24: #{tpu_custom_call.1} parent=1 // pred_region
      _
    $region25: #{tpu_custom_call.1} parent=1 // pred_fallthru
      _
    // Predicated region
    $region26: #{tpu_custom_call.1} parent=1 // pred_check
      _
    $region27: #{tpu_custom_call.1} parent=1 // pred_check_branch
      %38 = sbr.rel (0) target = $region29
    $region28: #{tpu_custom_call.1} parent=1 // pred_region
      _
    $region29: #{tpu_custom_call.1} parent=1 // pred_fallthru
      _
    // Predicated region
    $region30: #{tpu_custom_call.1} parent=1 // pred_check
      _
    $region31: #{tpu_custom_call.1} parent=1 // pred_check_branch
      %40 = sbr.rel (0) target = $region33
    $region32: #{tpu_custom_call.1} parent=1 // pred_region
      _
    $region33: #{tpu_custom_call.1} parent=1 // pred_fallthru
      _
    // Predicated region
    $region34: #{tpu_custom_call.1} parent=1 // pred_check
      _
    $region35: #{tpu_custom_call.1} parent=1 // pred_check_branch
      %42 = sbr.rel (0) target = $region37
    $region36: #{tpu_custom_call.1} parent=1 // pred_region
      %43 = dma.done [#allocation3], 4096
    $region37: #{tpu_custom_call.1} parent=1 // pred_fallthru
      _
    %v44 = vld [vmem:[%s0] sm:$0xff]
    %v45 = vld [vmem:[%s0 + $0x8] sm:$0xff]
    %v46 = vld [vmem:[%s1] sm:$0xff]
    %v47 = vld [vmem:[%s1 + $0x8] sm:$0xff]
    %v48 = vld [vmem:[%s2] sm:$0xff]
    %v49 = vld [vmem:[%s2 + $0x8] sm:$0xff]
    %v50 = vlaneseq
    %v51 = vand.u32 %v50, 127
    %v52 = vadd.s32 %v51, 128
    %53 = vset.pattern.permute.xlu0 0
    %54 = vperm.xlu0 %53, %v44
    %v55 = vpop.permute.xlu0 %54
    %56 = vset.pattern.permute.xlu0 0
    %57 = vperm.xlu0 %56, %v45
    %v58 = vpop.permute.xlu0 %57
    %vm59 = vcmp.eq.s32.totalorder %v55, %v51
    %vm60 = vcmp.eq.s32.totalorder %v55, %v52
    %vm61 = vcmp.eq.s32.totalorder %v58, %v51
    %vm62 = vcmp.eq.s32.totalorder %v58, %v52
    %v63 = vsel %vm59, 1, 0
    %v64 = vsel %vm60, 1, 0
    %v65 = vsel %vm61, 1, 0
    %v66 = vsel %vm62, 1, 0
    %v67 = vcvt.s32.f32 %v63
    %v68 = vcvt.s32.f32 %v64
    %v69 = vcvt.s32.f32 %v65
    %v70 = vcvt.s32.f32 %v66
    %v71 = vld [vmem:[#allocation2] sm:$0xff]
    %v72 = vld [vmem:[#allocation2 + $0x8] sm:$0xff]
    %v73 = vld [vmem:[#allocation2 + $0x10] sm:$0xff]
    %v74 = vld [vmem:[#allocation2 + $0x18] sm:$0xff]
    %v75 = vld [vmem:[#allocation2 + $0x20] sm:$0xff]
    %v76 = vld [vmem:[#allocation2 + $0x28] sm:$0xff]
    %v77 = vld [vmem:[#allocation2 + $0x30] sm:$0xff]
    %v78 = vld [vmem:[#allocation2 + $0x38] sm:$0xff]
    %v79 = vld [vmem:[#allocation2 + $0x40] sm:$0xff]
    %v80 = vld [vmem:[#allocation2 + $0x48] sm:$0xff]
    %v81 = vld [vmem:[#allocation2 + $0x50] sm:$0xff]
    %v82 = vld [vmem:[#allocation2 + $0x58] sm:$0xff]
    %v83 = vld [vmem:[#allocation2 + $0x60] sm:$0xff]
    %v84 = vld [vmem:[#allocation2 + $0x68] sm:$0xff]
    %v85 = vld [vmem:[#allocation2 + $0x70] sm:$0xff]
    %v86 = vld [vmem:[#allocation2 + $0x78] sm:$0xff]
    %v87 = vld [vmem:[#allocation2 + $0x80] sm:$0xff]
    %v88 = vld [vmem:[#allocation2 + $0x88] sm:$0xff]
    %v89 = vld [vmem:[#allocation2 + $0x90] sm:$0xff]
    %v90 = vld [vmem:[#allocation2 + $0x98] sm:$0xff]
    %v91 = vld [vmem:[#allocation2 + $0xa0] sm:$0xff]
    %v92 = vld [vmem:[#allocation2 + $0xa8] sm:$0xff]
    %v93 = vld [vmem:[#allocation2 + $0xb0] sm:$0xff]
    %v94 = vld [vmem:[#allocation2 + $0xb8] sm:$0xff]
    %v95 = vld [vmem:[#allocation2 + $0xc0] sm:$0xff]
    %v96 = vld [vmem:[#allocation2 + $0xc8] sm:$0xff]
    %v97 = vld [vmem:[#allocation2 + $0xd0] sm:$0xff]
    %v98 = vld [vmem:[#allocation2 + $0xd8] sm:$0xff]
    %v99 = vld [vmem:[#allocation2 + $0xe0] sm:$0xff]
    %v100 = vld [vmem:[#allocation2 + $0xe8] sm:$0xff]
    %v101 = vld [vmem:[#allocation2 + $0xf0] sm:$0xff]
    %v102 = vld [vmem:[#allocation2 + $0xf8] sm:$0xff]
    %103 = vset.pattern.permute.xlu0 0
    %104 = vperm.xlu0 %103, %v46
    %v105 = vpop.permute.xlu0 %104
    %106 = vset.pattern.permute.xlu0 0
    %107 = vperm.xlu0 %106, %v47
    %v108 = vpop.permute.xlu0 %107
    %vm109 = vcmp.eq.s32.totalorder %v105, %v51
    %vm110 = vcmp.eq.s32.totalorder %v108, %v51
    %v111 = vsel %vm109, 1, 0
    %v112 = vsel %vm110, 1, 0
    %v113 = vcvt.s32.f32 %v111
    %v114 = vcvt.s32.f32 %v112
    %v115 = vld [vmem:[%s4] sm:$0xff]
    %v116 = vld [vmem:[%s4 + $0x8] sm:$0xff]
    %v117 = vld [vmem:[%s4 + $0x10] sm:$0xff]
    %v118 = vld [vmem:[%s4 + $0x18] sm:$0xff]
    %v119 = vld [vmem:[%s4 + $0x20] sm:$0xff]
    %v120 = vld [vmem:[%s4 + $0x28] sm:$0xff]
    %v121 = vld [vmem:[%s4 + $0x30] sm:$0xff]
    %v122 = vld [vmem:[%s4 + $0x38] sm:$0xff]
    %vm123 = vcmask 523264
    %v125 = vsel %vm123, %v113, 0
    %v128 = vsel %vm123, %v114, 0
    %130 = vmatprep.subr.mxu0 0.0
    %131 = vmatpush1.msra.mxu0 %v115
    %132 = vmatprep.subr.mxu0 0.0
    %133 = vmatpush1.msra.mxu0 %v116
    %134 = vmatprep.subr.mxu0 0.0
    %135 = vmatpush1.msra.mxu0 %v117
    %136 = vmatprep.subr.mxu0 0.0
    %137 = vmatpush1.msra.mxu0 %v118
    %138 = vmatprep.subr.mxu0 0.0
    %139 = vmatpush1.msra.mxu0 %v119
    %140 = vmatprep.subr.mxu0 0.0
    %141 = vmatpush1.msra.mxu0 %v120
    %142 = vmatprep.subr.mxu0 0.0
    %143 = vmatpush1.msra.mxu0 %v121
    %144 = vmatprep.subr.mxu0 0.0
    %145 = vmatpush1.msra.mxu0 %v122
    %146 = vmatprep.subr.mxu0 0.0
    %147 = vmatpush1.msra.mxu0 0.0
    %148 = vmatprep.subr.mxu0 0.0
    %149 = vmatpush1.msra.mxu0 0.0
    %150 = vmatprep.subr.mxu0 0.0
    %151 = vmatpush1.msra.mxu0 0.0
    %152 = vmatprep.subr.mxu0 0.0
    %153 = vmatpush1.msra.mxu0 0.0
    %154 = vmatprep.subr.mxu0 0.0
    %155 = vmatpush1.msra.mxu0 0.0
    %156 = vmatprep.subr.mxu0 0.0
    %157 = vmatpush1.msra.mxu0 0.0
    %158 = vmatprep.subr.mxu0 0.0
    %159 = vmatpush1.msra.mxu0 0.0
    %160 = vmatprep.subr.mxu0 0.0
    %161 = vmatpush1.msra.mxu0 0.0
    %162 = vmatprep.subr.mxu0 0.0
    %163 = vmatpush1.msra.mxu0 0.0
    %164 = vmatprep.subr.mxu0 0.0
    %165 = vmatpush1.msra.mxu0 0.0
    %166 = vmatprep.subr.mxu0 0.0
    %167 = vmatpush1.msra.mxu0 0.0
    %168 = vmatprep.subr.mxu0 0.0
    %169 = vmatpush1.msra.mxu0 0.0
    %170 = vmatprep.subr.mxu0 0.0
    %171 = vmatpush1.msra.mxu0 0.0
    %172 = vmatprep.subr.mxu0 0.0
    %173 = vmatpush1.msra.mxu0 0.0
    %174 = vmatprep.subr.mxu0 0.0
    %175 = vmatpush1.msra.mxu0 0.0
    %176 = vmatprep.subr.mxu0 0.0
    %177 = vmatpush1.msra.mxu0 0.0
    %178 = vmatprep.subr.mxu0 0.0
    %179 = vmatpush1.msra.mxu0 0.0
    %180 = vmatprep.subr.mxu0 0.0
    %181 = vmatpush1.msra.mxu0 0.0
    %182 = vmatprep.subr.mxu0 0.0
    %183 = vmatpush1.msra.mxu0 0.0
    %184 = vmatprep.subr.mxu0 0.0
    %185 = vmatpush1.msra.mxu0 0.0
    %186 = vmatprep.subr.mxu0 0.0
    %187 = vmatpush1.msra.mxu0 0.0
    %188 = vmatprep.subr.mxu0 0.0
    %189 = vmatpush1.msra.mxu0 0.0
    %190 = vmatprep.subr.mxu0 0.0
    %191 = vmatpush1.msra.mxu0 0.0
    %192 = vmatprep.subr.mxu0 0.0
    %193 = vmatpush1.msra.mxu0 0.0
    %194 = vmatprep.mubr.f32.mxu0 0.0
    %195 = vmatmul.mubr.f32.gmra.mrb[0].mxu0 %v125
    %v196 = vpop.f32.mrb[0].mxu0
    %v197 = vadd.f32 0.0, %v196
    %v198 = vpop.f32.mrb[0].mxu0
    %199 = vmatprep.mubr.f32.mxu0 0.0
    %200 = vmatmul.mubr.f32.gmra.mrb[0].mxu0 %v128
    %v201 = vpop.f32.mrb[0].mxu0
    %v202 = vadd.f32 0.0, %v201
    %v203 = vpop.f32.mrb[0].mxu0
    %204 = vdwg.mxu0
    %205 = vmatprep.subr.mxu0 0.0
    %206 = vmatpush1.msra.mxu0 %v71
    %207 = vmatprep.subr.mxu0 0.0
    %208 = vmatpush1.msra.mxu0 %v72
    %209 = vmatprep.subr.mxu0 0.0
    %210 = vmatpush1.msra.mxu0 %v73
    %211 = vmatprep.subr.mxu0 0.0
    %212 = vmatpush1.msra.mxu0 %v74
    %213 = vmatprep.subr.mxu0 0.0
    %214 = vmatpush1.msra.mxu0 %v75
    %215 = vmatprep.subr.mxu0 0.0
    %216 = vmatpush1.msra.mxu0 %v76
    %217 = vmatprep.subr.mxu0 0.0
    %218 = vmatpush1.msra.mxu0 %v77
    %219 = vmatprep.subr.mxu0 0.0
    %220 = vmatpush1.msra.mxu0 %v78
    %221 = vmatprep.subr.mxu0 0.0
    %222 = vmatpush1.msra.mxu0 %v79
    %223 = vmatprep.subr.mxu0 0.0
    %224 = vmatpush1.msra.mxu0 %v80
    %225 = vmatprep.subr.mxu0 0.0
    %226 = vmatpush1.msra.mxu0 %v81
    %227 = vmatprep.subr.mxu0 0.0
    %228 = vmatpush1.msra.mxu0 %v82
    %229 = vmatprep.subr.mxu0 0.0
    %230 = vmatpush1.msra.mxu0 %v83
    %231 = vmatprep.subr.mxu0 0.0
    %232 = vmatpush1.msra.mxu0 %v84
    %233 = vmatprep.subr.mxu0 0.0
    %234 = vmatpush1.msra.mxu0 %v85
    %235 = vmatprep.subr.mxu0 0.0
    %236 = vmatpush1.msra.mxu0 %v86
    %237 = vmatprep.subr.mxu0 0.0
    %238 = vmatpush1.msra.mxu0 %v87
    %239 = vmatprep.subr.mxu0 0.0
    %240 = vmatpush1.msra.mxu0 %v88
    %241 = vmatprep.subr.mxu0 0.0
    %242 = vmatpush1.msra.mxu0 %v89
    %243 = vmatprep.subr.mxu0 0.0
    %244 = vmatpush1.msra.mxu0 %v90
    %245 = vmatprep.subr.mxu0 0.0
    %246 = vmatpush1.msra.mxu0 %v91
    %247 = vmatprep.subr.mxu0 0.0
    %248 = vmatpush1.msra.mxu0 %v92
    %249 = vmatprep.subr.mxu0 0.0
    %250 = vmatpush1.msra.mxu0 %v93
    %251 = vmatprep.subr.mxu0 0.0
    %252 = vmatpush1.msra.mxu0 %v94
    %253 = vmatprep.subr.mxu0 0.0
    %254 = vmatpush1.msra.mxu0 %v95
    %255 = vmatprep.subr.mxu0 0.0
    %256 = vmatpush1.msra.mxu0 %v96
    %257 = vmatprep.subr.mxu0 0.0
    %258 = vmatpush1.msra.mxu0 %v97
    %259 = vmatprep.subr.mxu0 0.0
    %260 = vmatpush1.msra.mxu0 %v98
    %261 = vmatprep.subr.mxu0 0.0
    %262 = vmatpush1.msra.mxu0 %v99
    %263 = vmatprep.subr.mxu0 0.0
    %264 = vmatpush1.msra.mxu0 %v100
    %265 = vmatprep.subr.mxu0 0.0
    %266 = vmatpush1.msra.mxu0 %v101
    %267 = vmatprep.subr.mxu0 0.0
    %268 = vmatpush1.msra.mxu0 %v102
    %269 = vmatprep.mubr.f32.mxu0 %v68
    %270 = vmatmul.mubr.f32.gmra.mrb[0].mxu0 %v67
    %v271 = vpop.f32.mrb[0].mxu0
    %v272 = vadd.f32 %v197, %v271
    %v273 = vpop.f32.mrb[0].mxu0
    %274 = vmatprep.mubr.f32.mxu0 %v70
    %275 = vmatmul.mubr.f32.gmra.mrb[0].mxu0 %v69
    %v276 = vpop.f32.mrb[0].mxu0
    %v277 = vadd.f32 %v202, %v276
    %v278 = vpop.f32.mrb[0].mxu0
    %279 = vdwg.mxu0
    %v280 = vld [vmem:[%s5] sm:$0x3]
    %vm281 = vcmp.eq.s32.totalorder %v48, 0
    %vm282 = vcmp.eq.s32.totalorder %v49, 0
    %v283 = vsel %vm281, 1, 0
    %v284 = vsel %vm282, 1, 0
    %v285 = vcvt.s32.f32 %v283
    %v286 = vcvt.s32.f32 %v284
    %288 = vset.pattern.permute.xlu0 0
    %289 = vperm.xlu0 %288, %v285
    %v290 = vpop.permute.xlu0 %289
    %293 = vset.pattern.permute.xlu0 0
    %294 = vperm.xlu0 %293, %v286
    %v295 = vpop.permute.xlu0 %294
    %v297 = vlaneseq
    %v298 = vshrl.u32 %v297, 7
    %v299 = vsub.s32 0, %v298
    %v300 = vrot.slane %v280, %v299
    %v301 = vmul.f32 %v290, %v300
    %v302 = vmul.f32 %v295, %v300
    %v303 = vadd.f32 %v301, 0.0
    %v304 = vadd.f32 %v302, 0.0
    %vm305 = vcmp.eq.s32.totalorder %v48, 1
    %vm306 = vcmp.eq.s32.totalorder %v49, 1
    %v307 = vsel %vm305, 1, 0
    %v308 = vsel %vm306, 1, 0
    %v309 = vcvt.s32.f32 %v307
    %v310 = vcvt.s32.f32 %v308
    %312 = vset.pattern.permute.xlu0 0
    %313 = vperm.xlu0 %312, %v309
    %v314 = vpop.permute.xlu0 %313
    %317 = vset.pattern.permute.xlu0 0
    %318 = vperm.xlu0 %317, %v310
    %v319 = vpop.permute.xlu0 %318
    %v321 = vlaneseq
    %v322 = vshrl.u32 %v321, 7
    %v323 = vsub.s32 1, %v322
    %v324 = vrot.slane %v280, %v323
    %v325 = vmul.f32 %v314, %v324
    %v326 = vmul.f32 %v319, %v324
    %v327 = vadd.f32 %v303, %v325
    %v328 = vadd.f32 %v304, %v326
    %v329 = vadd.f32 %v272, %v327
    %v330 = vadd.f32 %v277, %v328
    %331 = vadd.xlane.f32.xlu0 %v329
    %v332 = vpop.xlane.xlu0 %331
    %333 = vadd.xlane.f32.xlu0 %v330
    %v334 = vpop.xlane.xlu0 %333
    %v335 = vrcp.pop 128.0
    %v336 = vmul.f32 %v332, %v335
    %v337 = vmul.f32 %v334, %v335
    %v338 = vsub.f32 %v329, %v336
    %v339 = vsub.f32 %v330, %v337
    %v340 = vmul.f32 %v338, %v338
    %v341 = vmul.f32 %v339, %v339
    %342 = vadd.xlane.f32.xlu0 %v340
    %v343 = vpop.xlane.xlu0 %342
    %344 = vadd.xlane.f32.xlu0 %v341
    %v345 = vpop.xlane.xlu0 %344
    %v346 = vmul.f32 %v343, %v335
    %v347 = vmul.f32 %v345, %v335
    %v348 = vadd.f32 %v346, 1e-12
    %v349 = vadd.f32 %v347, 1e-12
    %v350 = vrsqrt.pop %v348
    %v351 = vrsqrt.pop %v349
    %v352 = vmul.f32 %v338, %v350
    %v353 = vmul.f32 %v339, %v351
    %v354 = vld [vmem:[%s6] sm:$0x1]
    %v356 = vlaneseq
    %v357 = vshrl.u32 %v356, 7
    %v358 = vsub.s32 0, %v357
    %v359 = vrot.slane %v354, %v358
    %v361 = vmul.f32 %v352, %v359
    %v362 = vmul.f32 %v353, %v359
    %v363 = vld [vmem:[%s7] sm:$0x1]
    %v365 = vlaneseq
    %v366 = vshrl.u32 %v365, 7
    %v367 = vsub.s32 0, %v366
    %v368 = vrot.slane %v363, %v367
    %v370 = vadd.f32 %v361, %v368
    %v371 = vadd.f32 %v362, %v368
    %372 = vst [vmem:[#allocation5] sm:$0xff] %v370
    %373 = vst [vmem:[#allocation5 + $0x8] sm:$0xff] %v371
    // Predicated region
    $region38: #{tpu_custom_call.1} parent=1 // pred_check
      _
    $region39: #{tpu_custom_call.1} parent=1 // pred_check_branch
      %375 = sbr.rel (0) target = $region41
    $region40: #{tpu_custom_call.1} parent=1 // pred_region
      %s377 = ssub.s32 256, 256
      %378 = vsyncadd [#allocation4], %s377
      %s379 = sshll.u32 [#allocation5], 4
      %s380 = int_to_ptr.vmem [resolvable:$true] %s379
      %385 = dma.vmem_to_hbm [thread:$0]  %s380, 256, %s8, [#allocation4], 128, 128, 8
    $region41: #{tpu_custom_call.1} parent=1 // pred_fallthru
      _
    // Predicated region
    $region42: #{tpu_custom_call.1} parent=1 // pred_check
      _
    $region43: #{tpu_custom_call.1} parent=1 // pred_check_branch
      %387 = sbr.rel (0) target = $region45
    $region44: #{tpu_custom_call.1} parent=1 // pred_region
      %388 = dma.done [#allocation4], 256
    $region45: #{tpu_custom_call.1} parent=1 // pred_fallthru
      _
    %389 = vsyncpa [#allocation3], 1
    %390 = vsyncpa [#allocation4], 1

</llo_original>
